<compile_context>
chip_gen: v7x
topology: tpu7x:2x2x1
jax: 0.10.0
libtpu: 0.0.40
codegen_flags: <defaults>
</compile_context>

<pallas_src>
import jax
import jax.numpy as jnp
from jax.experimental import pallas as pl
from jax.experimental.pallas import tpu as pltpu

LANE = 128      # vreg lane width  (last dim alignment)
SUBLANE = 8     # vreg sublane width (second-to-last dim alignment)


def _round_up(n, m):
    return ((n + m - 1) // m) * m


# ----------------------------------------------------------------------------
# Fused Pallas kernel (whole VAE forward on one batch tile)
# ----------------------------------------------------------------------------
def _make_beta_vae_kernel(n_enc, n_dec, latent_pad):
    """Build the fused kernel for a model with n_enc encoder and n_dec decoder
    Linear+ReLU layers. `latent_pad` is the padded latent width (multiple of 128)."""

    def kernel(*refs):
        it = iter(refs)
        x_ref = next(it)
        eps_ref = next(it)
        enc = [(next(it), next(it)) for _ in range(n_enc)]
        wh_ref, bh_ref = next(it), next(it)          # merged [mu | logvar] head
        dec = [(next(it), next(it)) for _ in range(n_dec)]
        wr_ref, br_ref = next(it), next(it)          # recon layer
        recon_ref, heads_ref = next(it), next(it)    # outputs

        f32 = jnp.float32

        # ---- encoder (Linear + ReLU stack), all in VMEM ----
        # (PyTorch module runs the deterministic encoder twice, once for mu and
        #  once for logvar; results are identical, so it is computed once.)
        h = x_ref[...]
        for w_ref, b_ref in enc:
            h = jnp.maximum(
                b_ref[...] + jnp.dot(h, w_ref[...], preferred_element_type=f32), 0.0
            )

        # ---- merged mu/logvar head: one MXU push -> (TB, 2*latent_pad) ----
        heads = bh_ref[...] + jnp.dot(h, wh_ref[...], preferred_element_type=f32)
        mu = heads[:, :latent_pad]          # lane-aligned static slices
        logvar = heads[:, latent_pad:]

        # ---- reparameterization: z = mu + eps * exp(0.5 * logvar) ----
        z = mu + eps_ref[...] * jnp.exp(0.5 * logvar)

        # ---- decoder (Linear + ReLU stack) ----
        d = z
        for w_ref, b_ref in dec:
            d = jnp.maximum(
                b_ref[...] + jnp.dot(d, w_ref[...], preferred_element_type=f32), 0.0
            )

        # ---- reconstruction head + sigmoid ----
        r = jax.nn.sigmoid(
            br_ref[...] + jnp.dot(d, wr_ref[...], preferred_element_type=f32)
        )

        recon_ref[...] = r.astype(recon_ref.dtype)
        heads_ref[...] = heads.astype(heads_ref.dtype)

    return kernel


# ----------------------------------------------------------------------------
# Parameter construction / packing
# ----------------------------------------------------------------------------
def init_linear(key, d_in, d_out, dtype=jnp.float32):
    """Deterministic init mimicking nn.Linear's U(-1/sqrt(in), 1/sqrt(in))."""
    kw, kb = jax.random.split(key)
    bound = 1.0 / jnp.sqrt(jnp.asarray(d_in, dtype))
    w = jax.random.uniform(kw, (d_in, d_out), dtype, minval=-bound, maxval=bound)
    b = jax.random.uniform(kb, (1, d_out), dtype, minval=-bound, maxval=bound)
    return w, b


def init_beta_vae_params(key, num_feats, latent_dims, hidden_dims):
    params = {}
    keys = jax.random.split(key, 2 * len(hidden_dims) + 3)
    ki = iter(range(len(keys)))

    # encoder: num_feats -> hidden_dims[0] -> ... -> hidden_dims[-1]
    enc = []
    d_in = num_feats
    for h in hidden_dims:
        enc.append(init_linear(keys[next(ki)], d_in, h))
        d_in = h
    params["encoder"] = enc

    params["for_mu"] = init_linear(keys[next(ki)], hidden_dims[-1], latent_dims)
    params["for_logvar"] = init_linear(keys[next(ki)], hidden_dims[-1], latent_dims)

    # PyTorch code does hidden_dims.reverse() in place:
    # decoder: latent_dims -> reversed(hidden_dims); recon: reversed[-1] -> num_feats
    rev = list(reversed(hidden_dims))
    dec = []
    d_in = latent_dims
    for h in rev:
        dec.append(init_linear(keys[next(ki)], d_in, h))
        d_in = h
    params["decoder"] = dec
    params["recon"] = init_linear(keys[next(ki)], rev[-1], num_feats)
    return params


def pack_params(params, latent_dims):
    """Zero-pad every weight/bias to lane-dense (multiple-of-128) shapes and
    concatenate the mu/logvar heads into one weight. Done once, host-side."""

    def pad_wb(w, b):
        din, dout = w.shape
        dip, dop = _round_up(din, LANE), _round_up(dout, LANE)
        wp = jnp.zeros((dip, dop), w.dtype).at[:din, :dout].set(w)
        bp = jnp.zeros((1, dop), b.dtype).at[:, :dout].set(b)
        return wp, bp

    packed = {
        "encoder": [pad_wb(w, b) for w, b in params["encoder"]],
        "decoder": [pad_wb(w, b) for w, b in params["decoder"]],
        "recon": pad_wb(*params["recon"]),
    }

    # merged [mu | logvar] head: (h_pad, 2 * l_pad)
    wm, bm = params["for_mu"]
    wl, bl = params["for_logvar"]
    h_last = wm.shape[0]
    h_pad = _round_up(h_last, LANE)
    l_pad = _round_up(latent_dims, LANE)

    wh = jnp.zeros((h_pad, 2 * l_pad), wm.dtype)
    wh = wh.at[:h_last, :latent_dims].set(wm)
    wh = wh.at[:h_last, l_pad:l_pad + latent_dims].set(wl)
    bh = jnp.zeros((1, 2 * l_pad), bm.dtype)
    bh = bh.at[:, :latent_dims].set(bm)
    bh = bh.at[:, l_pad:l_pad + latent_dims].set(bl)
    packed["heads"] = (wh, bh)
    return packed


# ----------------------------------------------------------------------------
# Fused forward
# ----------------------------------------------------------------------------
def beta_vae_forward(packed, x, eps):
    """Returns (recon_x, mu, logvar) — same semantics as BETA_VAE.forward."""
    B, num_feats = x.shape
    latent = eps.shape[1]
    dtype = x.dtype

    f_pad = _round_up(num_feats, LANE)
    l_pad = packed["heads"][0].shape[1] // 2

    # batch tiling: one tile for small batches, 128-row tiles for large ones
    tb = LANE if B >= LANE else _round_up(B, SUBLANE)
    b_pad = _round_up(B, tb)

    x_pad = jnp.zeros((b_pad, f_pad), dtype).at[:B, :num_feats].set(x)
    eps_pad = jnp.zeros((b_pad, l_pad), dtype).at[:B, :latent].set(eps)

    enc, dec = packed["encoder"], packed["decoder"]
    wh, bh = packed["heads"]
    wr, br = packed["recon"]

    flat_params = []
    for w, b in enc:
        flat_params += [w, b]
    flat_params += [wh, bh]
    for w, b in dec:
        flat_params += [w, b]
    flat_params += [wr, br]

    kernel = _make_beta_vae_kernel(len(enc), len(dec), l_pad)

    def batch_spec(width):  # tiled over batch
        return pl.BlockSpec((tb, width), lambda i: (i, 0))

    def resident_spec(arr):  # same full block every grid step -> stays in VMEM
        shp = arr.shape
        return pl.BlockSpec(shp, lambda i: (0,) * len(shp))

    in_specs = [batch_spec(f_pad), batch_spec(l_pad)] + [
        resident_spec(p) for p in flat_params
    ]
    out_specs = (batch_spec(f_pad), batch_spec(2 * l_pad))
    out_shape = (
        jax.ShapeDtypeStruct((b_pad, f_pad), dtype),
        jax.ShapeDtypeStruct((b_pad, 2 * l_pad), dtype),
    )

    recon_p, heads_p = pl.pallas_call(
        kernel,
        out_shape=out_shape,
        grid_spec=pltpu.PrefetchScalarGridSpec(
            num_scalar_prefetch=0,
            grid=(b_pad // tb,),
            in_specs=in_specs,
            out_specs=out_specs,
        ),
        compiler_params=pltpu.CompilerParams(dimension_semantics=("parallel",)),
    )(x_pad, eps_pad, *flat_params)

    return (
        recon_p[:B, :num_feats],
        heads_p[:B, :latent],                       # mu
        heads_p[:B, l_pad:l_pad + latent],          # logvar
    )


# ----------------------------------------------------------------------------
# Pure-JAX reference (unpadded) for correctness checking
# ----------------------------------------------------------------------------
def beta_vae_reference(params, x, eps):
    h = x
    for w, b in params["encoder"]:
        h = jnp.maximum(h @ w + b, 0.0)
    mu = h @ params["for_mu"][0] + params["for_mu"][1]
    logvar = h @ params["for_logvar"][0] + params["for_logvar"][1]
    z = mu + eps * jnp.exp(0.5 * logvar)
    d = z
    for w, b in params["decoder"]:
        d = jnp.maximum(d @ w + b, 0.0)
    recon = jax.nn.sigmoid(d @ params["recon"][0] + params["recon"][1])
    return recon, mu, logvar


# ----------------------------------------------------------------------------
# main
# ----------------------------------------------------------------------------
if __name__ == "__main__":
    num_feats = 16
    latent_dims = 8
    hidden_dims = [32, 16]
    batch = 8

    root = jax.random.PRNGKey(0)
    k_params, k_x, k_eps = jax.random.split(root, 3)

    params = init_beta_vae_params(k_params, num_feats, latent_dims, hidden_dims)
    packed = pack_params(params, latent_dims)

    x = jax.random.uniform(k_x, (batch, num_feats), jnp.float32)   # in [0,1) like BCE targets
    eps = jax.random.normal(k_eps, (batch, latent_dims), jnp.float32)

    fwd = jax.jit(beta_vae_forward)
    recon_x, mu, logvar = fwd(packed, x, eps)
    jax.block_until_ready((recon_x, mu, logvar))

    # shape / sanity checks
    assert recon_x.shape == (batch, num_feats)
    assert mu.shape == (batch, latent_dims)
    assert logvar.shape == (batch, latent_dims)
    assert bool(jnp.all(jnp.isfinite(recon_x)))
    assert bool(jnp.all((recon_x >= 0.0) & (recon_x <= 1.0)))

    # numerical check vs pure-JAX reference (loose tol: MXU matmul passes may
    # differ slightly in precision from the XLA reference dot)
    ref_recon, ref_mu, ref_logvar = beta_vae_reference(params, x, eps)
    assert bool(jnp.allclose(recon_x, ref_recon, atol=2e-2, rtol=2e-2))
    assert bool(jnp.allclose(mu, ref_mu, atol=2e-2, rtol=2e-2))
    assert bool(jnp.allclose(logvar, ref_logvar, atol=2e-2, rtol=2e-2))

    print("KERNEL_OK")
</pallas_src>

<mosaic_0001>
module attributes {stable_mosaic.version = 11 : i64} {
  func.func @kernel(%arg0: i32, %arg1: memref<8x128xf32, #tpu.memory_space<vmem>>, %arg2: memref<8x128xf32, #tpu.memory_space<vmem>>, %arg3: memref<128x128xf32, #tpu.memory_space<vmem>>, %arg4: memref<1x128xf32, #tpu.memory_space<vmem>>, %arg5: memref<128x128xf32, #tpu.memory_space<vmem>>, %arg6: memref<1x128xf32, #tpu.memory_space<vmem>>, %arg7: memref<128x256xf32, #tpu.memory_space<vmem>>, %arg8: memref<1x256xf32, #tpu.memory_space<vmem>>, %arg9: memref<128x128xf32, #tpu.memory_space<vmem>>, %arg10: memref<1x128xf32, #tpu.memory_space<vmem>>, %arg11: memref<128x128xf32, #tpu.memory_space<vmem>>, %arg12: memref<1x128xf32, #tpu.memory_space<vmem>>, %arg13: memref<128x128xf32, #tpu.memory_space<vmem>>, %arg14: memref<1x128xf32, #tpu.memory_space<vmem>>, %arg15: memref<8x128xf32, #tpu.memory_space<vmem>>, %arg16: memref<8x256xf32, #tpu.memory_space<vmem>>) attributes {dimension_semantics = [#tpu.dimension_semantics<parallel>], iteration_bounds = array<i64: 1>, scalar_prefetch = 0 : i64, scratch_operands = 0 : i64, tpu.core_type = #tpu.core_type<tc>, window_params = [{transform_indices = @transform_0, window_bounds = array<i64: 8, 128>}, {transform_indices = @transform_1, window_bounds = array<i64: 8, 128>}, {pipeline_mode = #tpu.pipeline_mode<synchronous>, transform_indices = @transform_2, window_bounds = array<i64: 128, 128>}, {pipeline_mode = #tpu.pipeline_mode<synchronous>, transform_indices = @transform_3, window_bounds = array<i64: 1, 128>}, {pipeline_mode = #tpu.pipeline_mode<synchronous>, transform_indices = @transform_4, window_bounds = array<i64: 128, 128>}, {pipeline_mode = #tpu.pipeline_mode<synchronous>, transform_indices = @transform_5, window_bounds = array<i64: 1, 128>}, {pipeline_mode = #tpu.pipeline_mode<synchronous>, transform_indices = @transform_6, window_bounds = array<i64: 128, 256>}, {pipeline_mode = #tpu.pipeline_mode<synchronous>, transform_indices = @transform_7, window_bounds = array<i64: 1, 256>}, {pipeline_mode = #tpu.pipeline_mode<synchronous>, transform_indices = @transform_8, window_bounds = array<i64: 128, 128>}, {pipeline_mode = #tpu.pipeline_mode<synchronous>, transform_indices = @transform_9, window_bounds = array<i64: 1, 128>}, {pipeline_mode = #tpu.pipeline_mode<synchronous>, transform_indices = @transform_10, window_bounds = array<i64: 128, 128>}, {pipeline_mode = #tpu.pipeline_mode<synchronous>, transform_indices = @transform_11, window_bounds = array<i64: 1, 128>}, {pipeline_mode = #tpu.pipeline_mode<synchronous>, transform_indices = @transform_12, window_bounds = array<i64: 128, 128>}, {pipeline_mode = #tpu.pipeline_mode<synchronous>, transform_indices = @transform_13, window_bounds = array<i64: 1, 128>}, {transform_indices = @transform_14, window_bounds = array<i64: 8, 128>}, {transform_indices = @transform_15, window_bounds = array<i64: 8, 256>}]} {
    %c0 = arith.constant 0 : index
    %c0_0 = arith.constant 0 : index
    %0 = vector.load %arg1[%c0, %c0_0] : memref<8x128xf32, #tpu.memory_space<vmem>>, vector<8x128xf32>
    %c0_1 = arith.constant 0 : index
    %c0_2 = arith.constant 0 : index
    %1 = vector.load %arg4[%c0_1, %c0_2] : memref<1x128xf32, #tpu.memory_space<vmem>>, vector<1x128xf32>
    %c0_3 = arith.constant 0 : index
    %c0_4 = arith.constant 0 : index
    %2 = vector.load %arg3[%c0_3, %c0_4] : memref<128x128xf32, #tpu.memory_space<vmem>>, vector<128x128xf32>
    %cst = arith.constant dense<0.000000e+00> : vector<8x128xf32>
    %3 = tpu.matmul %0, %2, %cst {dimension_numbers = #tpu.dot_dimension_numbers<[1], [0], [0], [1], [0, 0, 1, 1], [], []>} : vector<8x128xf32>, vector<128x128xf32>, vector<8x128xf32> -> vector<8x128xf32>
    %4 = vector.broadcast %1 : vector<1x128xf32> to vector<8x128xf32>
    %5 = arith.addf %4, %3 : vector<8x128xf32>
    %cst_5 = arith.constant 0.000000e+00 : f32
    %6 = vector.broadcast %cst_5 : f32 to vector<8x128xf32>
    %7 = arith.maximumf %5, %6 : vector<8x128xf32>
    %c0_6 = arith.constant 0 : index
    %c0_7 = arith.constant 0 : index
    %8 = vector.load %arg6[%c0_6, %c0_7] : memref<1x128xf32, #tpu.memory_space<vmem>>, vector<1x128xf32>
    %c0_8 = arith.constant 0 : index
    %c0_9 = arith.constant 0 : index
    %9 = vector.load %arg5[%c0_8, %c0_9] : memref<128x128xf32, #tpu.memory_space<vmem>>, vector<128x128xf32>
    %cst_10 = arith.constant dense<0.000000e+00> : vector<8x128xf32>
    %10 = tpu.matmul %7, %9, %cst_10 {dimension_numbers = #tpu.dot_dimension_numbers<[1], [0], [0], [1], [0, 0, 1, 1], [], []>} : vector<8x128xf32>, vector<128x128xf32>, vector<8x128xf32> -> vector<8x128xf32>
    %11 = vector.broadcast %8 : vector<1x128xf32> to vector<8x128xf32>
    %12 = arith.addf %11, %10 : vector<8x128xf32>
    %cst_11 = arith.constant 0.000000e+00 : f32
    %13 = vector.broadcast %cst_11 : f32 to vector<8x128xf32>
    %14 = arith.maximumf %12, %13 : vector<8x128xf32>
    %c0_12 = arith.constant 0 : index
    %c0_13 = arith.constant 0 : index
    %15 = vector.load %arg8[%c0_12, %c0_13] : memref<1x256xf32, #tpu.memory_space<vmem>>, vector<1x256xf32>
    %c0_14 = arith.constant 0 : index
    %c0_15 = arith.constant 0 : index
    %16 = vector.load %arg7[%c0_14, %c0_15] : memref<128x256xf32, #tpu.memory_space<vmem>>, vector<128x256xf32>
    %cst_16 = arith.constant dense<0.000000e+00> : vector<8x256xf32>
    %17 = tpu.matmul %14, %16, %cst_16 {dimension_numbers = #tpu.dot_dimension_numbers<[1], [0], [0], [1], [0, 0, 1, 1], [], []>} : vector<8x128xf32>, vector<128x256xf32>, vector<8x256xf32> -> vector<8x256xf32>
    %18 = vector.broadcast %15 : vector<1x256xf32> to vector<8x256xf32>
    %19 = arith.addf %18, %17 : vector<8x256xf32>
    %20 = vector.extract_strided_slice %19 {offsets = [0, 0], sizes = [8, 128], strides = [1, 1]} : vector<8x256xf32> to vector<8x128xf32>
    %21 = vector.extract_strided_slice %19 {offsets = [0, 128], sizes = [8, 128], strides = [1, 1]} : vector<8x256xf32> to vector<8x128xf32>
    %c0_17 = arith.constant 0 : index
    %c0_18 = arith.constant 0 : index
    %22 = vector.load %arg2[%c0_17, %c0_18] : memref<8x128xf32, #tpu.memory_space<vmem>>, vector<8x128xf32>
    %cst_19 = arith.constant 5.000000e-01 : f32
    %23 = vector.broadcast %cst_19 : f32 to vector<8x128xf32>
    %24 = arith.mulf %23, %21 : vector<8x128xf32>
    %25 = math.exp %24 : vector<8x128xf32>
    %26 = arith.mulf %22, %25 : vector<8x128xf32>
    %27 = arith.addf %20, %26 : vector<8x128xf32>
    %c0_20 = arith.constant 0 : index
    %c0_21 = arith.constant 0 : index
    %28 = vector.load %arg10[%c0_20, %c0_21] : memref<1x128xf32, #tpu.memory_space<vmem>>, vector<1x128xf32>
    %c0_22 = arith.constant 0 : index
    %c0_23 = arith.constant 0 : index
    %29 = vector.load %arg9[%c0_22, %c0_23] : memref<128x128xf32, #tpu.memory_space<vmem>>, vector<128x128xf32>
    %cst_24 = arith.constant dense<0.000000e+00> : vector<8x128xf32>
    %30 = tpu.matmul %27, %29, %cst_24 {dimension_numbers = #tpu.dot_dimension_numbers<[1], [0], [0], [1], [0, 0, 1, 1], [], []>} : vector<8x128xf32>, vector<128x128xf32>, vector<8x128xf32> -> vector<8x128xf32>
    %31 = vector.broadcast %28 : vector<1x128xf32> to vector<8x128xf32>
    %32 = arith.addf %31, %30 : vector<8x128xf32>
    %cst_25 = arith.constant 0.000000e+00 : f32
    %33 = vector.broadcast %cst_25 : f32 to vector<8x128xf32>
    %34 = arith.maximumf %32, %33 : vector<8x128xf32>
    %c0_26 = arith.constant 0 : index
    %c0_27 = arith.constant 0 : index
    %35 = vector.load %arg12[%c0_26, %c0_27] : memref<1x128xf32, #tpu.memory_space<vmem>>, vector<1x128xf32>
    %c0_28 = arith.constant 0 : index
    %c0_29 = arith.constant 0 : index
    %36 = vector.load %arg11[%c0_28, %c0_29] : memref<128x128xf32, #tpu.memory_space<vmem>>, vector<128x128xf32>
    %cst_30 = arith.constant dense<0.000000e+00> : vector<8x128xf32>
    %37 = tpu.matmul %34, %36, %cst_30 {dimension_numbers = #tpu.dot_dimension_numbers<[1], [0], [0], [1], [0, 0, 1, 1], [], []>} : vector<8x128xf32>, vector<128x128xf32>, vector<8x128xf32> -> vector<8x128xf32>
    %38 = vector.broadcast %35 : vector<1x128xf32> to vector<8x128xf32>
    %39 = arith.addf %38, %37 : vector<8x128xf32>
    %cst_31 = arith.constant 0.000000e+00 : f32
    %40 = vector.broadcast %cst_31 : f32 to vector<8x128xf32>
    %41 = arith.maximumf %39, %40 : vector<8x128xf32>
    %c0_32 = arith.constant 0 : index
    %c0_33 = arith.constant 0 : index
    %42 = vector.load %arg14[%c0_32, %c0_33] : memref<1x128xf32, #tpu.memory_space<vmem>>, vector<1x128xf32>
    %c0_34 = arith.constant 0 : index
    %c0_35 = arith.constant 0 : index
    %43 = vector.load %arg13[%c0_34, %c0_35] : memref<128x128xf32, #tpu.memory_space<vmem>>, vector<128x128xf32>
    %cst_36 = arith.constant dense<0.000000e+00> : vector<8x128xf32>
    %44 = tpu.matmul %41, %43, %cst_36 {dimension_numbers = #tpu.dot_dimension_numbers<[1], [0], [0], [1], [0, 0, 1, 1], [], []>} : vector<8x128xf32>, vector<128x128xf32>, vector<8x128xf32> -> vector<8x128xf32>
    %45 = vector.broadcast %42 : vector<1x128xf32> to vector<8x128xf32>
    %46 = arith.addf %45, %44 : vector<8x128xf32>
    %47 = arith.negf %46 : vector<8x128xf32>
    %48 = math.exp %47 : vector<8x128xf32>
    %cst_37 = arith.constant 1.000000e+00 : f32
    %49 = vector.broadcast %cst_37 : f32 to vector<8x128xf32>
    %50 = arith.addf %49, %48 : vector<8x128xf32>
    %51 = arith.divf %49, %50 : vector<8x128xf32>
    %c0_38 = arith.constant 0 : index
    %c0_39 = arith.constant 0 : index
    %52 = vector.load %arg15[%c0_38, %c0_39] : memref<8x128xf32, #tpu.memory_space<vmem>>, vector<8x128xf32>
    tpu.vector_store %arg15[%c0_38, %c0_39], %51 {strides = array<i32>} : memref<8x128xf32, #tpu.memory_space<vmem>>, vector<8x128xf32>,
    %c0_40 = arith.constant 0 : index
    %c0_41 = arith.constant 0 : index
    %53 = vector.load %arg16[%c0_40, %c0_41] : memref<8x256xf32, #tpu.memory_space<vmem>>, vector<8x256xf32>
    tpu.vector_store %arg16[%c0_40, %c0_41], %19 {strides = array<i32>} : memref<8x256xf32, #tpu.memory_space<vmem>>, vector<8x256xf32>,
    return
  }
  func.func @transform_0(%arg0: i32) -> (i32, i32) {
    %c0_i32 = arith.constant 0 : i32
    %c0_i32_0 = arith.constant 0 : i32
    return %arg0, %c0_i32 : i32, i32
  }
  func.func @transform_1(%arg0: i32) -> (i32, i32) {
    %c0_i32 = arith.constant 0 : i32
    %c0_i32_0 = arith.constant 0 : i32
    return %arg0, %c0_i32 : i32, i32
  }
  func.func @transform_2(%arg0: i32) -> (i32, i32) {
    %c0_i32 = arith.constant 0 : i32
    %c0_i32_0 = arith.constant 0 : i32
    %c0_i32_1 = arith.constant 0 : i32
    return %c0_i32, %c0_i32_0 : i32, i32
  }
  func.func @transform_3(%arg0: i32) -> (i32, i32) {
    %c0_i32 = arith.constant 0 : i32
    %c0_i32_0 = arith.constant 0 : i32
    %c0_i32_1 = arith.constant 0 : i32
    return %c0_i32, %c0_i32_0 : i32, i32
  }
  func.func @transform_4(%arg0: i32) -> (i32, i32) {
    %c0_i32 = arith.constant 0 : i32
    %c0_i32_0 = arith.constant 0 : i32
    %c0_i32_1 = arith.constant 0 : i32
    return %c0_i32, %c0_i32_0 : i32, i32
  }
  func.func @transform_5(%arg0: i32) -> (i32, i32) {
    %c0_i32 = arith.constant 0 : i32
    %c0_i32_0 = arith.constant 0 : i32
    %c0_i32_1 = arith.constant 0 : i32
    return %c0_i32, %c0_i32_0 : i32, i32
  }
  func.func @transform_6(%arg0: i32) -> (i32, i32) {
    %c0_i32 = arith.constant 0 : i32
    %c0_i32_0 = arith.constant 0 : i32
    %c0_i32_1 = arith.constant 0 : i32
    return %c0_i32, %c0_i32_0 : i32, i32
  }
  func.func @transform_7(%arg0: i32) -> (i32, i32) {
    %c0_i32 = arith.constant 0 : i32
    %c0_i32_0 = arith.constant 0 : i32
    %c0_i32_1 = arith.constant 0 : i32
    return %c0_i32, %c0_i32_0 : i32, i32
  }
  func.func @transform_8(%arg0: i32) -> (i32, i32) {
    %c0_i32 = arith.constant 0 : i32
    %c0_i32_0 = arith.constant 0 : i32
    %c0_i32_1 = arith.constant 0 : i32
    return %c0_i32, %c0_i32_0 : i32, i32
  }
  func.func @transform_9(%arg0: i32) -> (i32, i32) {
    %c0_i32 = arith.constant 0 : i32
    %c0_i32_0 = arith.constant 0 : i32
    %c0_i32_1 = arith.constant 0 : i32
    return %c0_i32, %c0_i32_0 : i32, i32
  }
  func.func @transform_10(%arg0: i32) -> (i32, i32) {
    %c0_i32 = arith.constant 0 : i32
    %c0_i32_0 = arith.constant 0 : i32
    %c0_i32_1 = arith.constant 0 : i32
    return %c0_i32, %c0_i32_0 : i32, i32
  }
  func.func @transform_11(%arg0: i32) -> (i32, i32) {
    %c0_i32 = arith.constant 0 : i32
    %c0_i32_0 = arith.constant 0 : i32
    %c0_i32_1 = arith.constant 0 : i32
    return %c0_i32, %c0_i32_0 : i32, i32
  }
  func.func @transform_12(%arg0: i32) -> (i32, i32) {
    %c0_i32 = arith.constant 0 : i32
    %c0_i32_0 = arith.constant 0 : i32
    %c0_i32_1 = arith.constant 0 : i32
    return %c0_i32, %c0_i32_0 : i32, i32
  }
  func.func @transform_13(%arg0: i32) -> (i32, i32) {
    %c0_i32 = arith.constant 0 : i32
    %c0_i32_0 = arith.constant 0 : i32
    %c0_i32_1 = arith.constant 0 : i32
    return %c0_i32, %c0_i32_0 : i32, i32
  }
  func.func @transform_14(%arg0: i32) -> (i32, i32) {
    %c0_i32 = arith.constant 0 : i32
    %c0_i32_0 = arith.constant 0 : i32
    return %arg0, %c0_i32 : i32, i32
  }
  func.func @transform_15(%arg0: i32) -> (i32, i32) {
    %c0_i32 = arith.constant 0 : i32
    %c0_i32_0 = arith.constant 0 : i32
    return %arg0, %c0_i32 : i32, i32
  }
}

</mosaic_0001>

<llo_original>
// kernel: beta_vae_forward.1
$region0: #{beta_vae_forward.1}
  #allocation0 [shape = 'u32[]', space=smem, size = 0x4, offset = 0x4, fixed_abs, tag = 'smem constant byte address 0x4 - core index']
  #allocation1 [shape = 'u32[144,128]{1,0:T(1,128)}', space=vmem, size = 0x12000, scoped, tag = 'internal scratch']
  %s0 = inlined_call_operand.vmem [shape: f32[8,128], index: 0, kind: input, shape index: {}]
  %s1 = inlined_call_operand.vmem [shape: f32[8,128], index: 1, kind: input, shape index: {}]
  %s2 = inlined_call_operand.hbm [shape: f32[128,128], index: 2, kind: input, shape index: {}]
  %s3 = inlined_call_operand.vmem [shape: f32[1,128], index: 3, kind: input, shape index: {}]
  %s4 = inlined_call_operand.hbm [shape: f32[128,128], index: 4, kind: input, shape index: {}]
  %s5 = inlined_call_operand.vmem [shape: f32[1,128], index: 5, kind: input, shape index: {}]
  %s6 = inlined_call_operand.hbm [shape: f32[128,256], index: 6, kind: input, shape index: {}]
  %s7 = inlined_call_operand.vmem [shape: f32[1,256], index: 7, kind: input, shape index: {}]
  %s8 = inlined_call_operand.hbm [shape: f32[128,128], index: 8, kind: input, shape index: {}]
  %s9 = inlined_call_operand.vmem [shape: f32[1,128], index: 9, kind: input, shape index: {}]
  %s10 = inlined_call_operand.hbm [shape: f32[128,128], index: 10, kind: input, shape index: {}]
  %s11 = inlined_call_operand.vmem [shape: f32[1,128], index: 11, kind: input, shape index: {}]
  %s12 = inlined_call_operand.hbm [shape: f32[128,128], index: 12, kind: input, shape index: {}]
  %s13 = inlined_call_operand.vmem [shape: f32[1,128], index: 13, kind: input, shape index: {}]
  %s14 = inlined_call_operand.hbm [shape: f32[8,128], index: 14, kind: output, shape index: {0}]
  %s15 = inlined_call_operand.vmem [shape: f32[8,256], index: 15, kind: output, shape index: {1}]
  %16 = xla_tuple %s14, %s15
  %s17 = sld [smem:[#allocation0]]
  $region98: #{beta_vae_forward.1} parent=0
    _
  %s19 = ssub.s32 1, %s17
  %s20 = scalar_select 0, %s19, %s17
  $region1: #{beta_vae_forward.1} parent=0
    #allocation2 [shape = 'u8[65536]{0}', space=vmem, size = 0x10000, scoped, tag = 'input window, operand 2, single buffered']
    #allocation3 [shape = 's32[1]{0}', space=sflag, size = 0x4, scoped, tag = 'scoped memory for beta_vae_forward.1']
    #allocation4 [shape = 's32[1]{0}', space=sflag, size = 0x4, scoped, tag = 'scoped memory for beta_vae_forward.1']
    #allocation5 [shape = 'u8[65536]{0}', space=vmem, size = 0x10000, scoped, tag = 'input window, operand 4, single buffered']
    #allocation6 [shape = 's32[1]{0}', space=sflag, size = 0x4, scoped, tag = 'scoped memory for beta_vae_forward.1']
    #allocation7 [shape = 'u8[131072]{0}', space=vmem, size = 0x20000, scoped, tag = 'input window, operand 6, single buffered']
    #allocation8 [shape = 'u8[65536]{0}', space=vmem, size = 0x10000, scoped, tag = 'input window, operand 8, single buffered']
    #allocation9 [shape = 's32[1]{0}', space=sflag, size = 0x4, scoped, tag = 'scoped memory for beta_vae_forward.1']
    #allocation10 [shape = 'u8[65536]{0}', space=vmem, size = 0x10000, scoped, tag = 'input window, operand 10, single buffered']
    #allocation11 [shape = 'u8[65536]{0}', space=vmem, size = 0x10000, scoped, tag = 'input window, operand 12, single buffered']
    #allocation12 [shape = 's32[1]{0}', space=sflag, size = 0x4, scoped, tag = 'scoped memory for beta_vae_forward.1']
    #allocation13 [shape = 'u8[4096]{0}', space=vmem, size = 0x1000, scoped, tag = 'output window, operand 0, single buffered']
    %21 = vsyncpa [#allocation3], 0
    %22 = vsyncpa [#allocation6], 0
    %23 = vsyncpa [#allocation9], 0
    %24 = vsyncpa [#allocation12], 0
    %25 = vsyncpa [#allocation4], 0
    // Predicated region
    $region2: #{beta_vae_forward.1} parent=1 // pred_check
      _
    $region3: #{beta_vae_forward.1} parent=1 // pred_check_branch
      %27 = sbr.rel (0) target = $region5
    $region4: #{beta_vae_forward.1} parent=1 // pred_region
      _
    $region5: #{beta_vae_forward.1} parent=1 // pred_fallthru
      _
    // Predicated region
    $region6: #{beta_vae_forward.1} parent=1 // pred_check
      _
    $region7: #{beta_vae_forward.1} parent=1 // pred_check_branch
      %29 = sbr.rel (0) target = $region9
    $region8: #{beta_vae_forward.1} parent=1 // pred_region
      _
    $region9: #{beta_vae_forward.1} parent=1 // pred_fallthru
      _
    // Predicated region
    $region10: #{beta_vae_forward.1} parent=1 // pred_check
      _
    $region11: #{beta_vae_forward.1} parent=1 // pred_check_branch
      %31 = sbr.rel (0) target = $region13
    $region12: #{beta_vae_forward.1} parent=1 // pred_region
      %s33 = ssub.s32 2048, 2048
      %34 = vsyncadd [#allocation3], %s33
      %s35 = sshll.u32 [#allocation2], 4
      %s36 = int_to_ptr.vmem [resolvable:$true] %s35
      %41 = dma.hbm_to_vmem [thread:$0]  %s2, 2048, %s36, [#allocation3], 128, 128, 8
    $region13: #{beta_vae_forward.1} parent=1 // pred_fallthru
      _
    // Predicated region
    $region14: #{beta_vae_forward.1} parent=1 // pred_check
      _
    $region15: #{beta_vae_forward.1} parent=1 // pred_check_branch
      %43 = sbr.rel (0) target = $region17
    $region16: #{beta_vae_forward.1} parent=1 // pred_region
      _
    $region17: #{beta_vae_forward.1} parent=1 // pred_fallthru
      _
    // Predicated region
    $region18: #{beta_vae_forward.1} parent=1 // pred_check
      _
    $region19: #{beta_vae_forward.1} parent=1 // pred_check_branch
      %45 = sbr.rel (0) target = $region21
    $region20: #{beta_vae_forward.1} parent=1 // pred_region
      %s47 = ssub.s32 2048, 2048
      %48 = vsyncadd [#allocation6], %s47
      %s49 = sshll.u32 [#allocation5], 4
      %s50 = int_to_ptr.vmem [resolvable:$true] %s49
      %55 = dma.hbm_to_vmem [thread:$0]  %s4, 2048, %s50, [#allocation6], 128, 128, 8
    $region21: #{beta_vae_forward.1} parent=1 // pred_fallthru
      _
    // Predicated region
    $region22: #{beta_vae_forward.1} parent=1 // pred_check
      _
    $region23: #{beta_vae_forward.1} parent=1 // pred_check_branch
      %57 = sbr.rel (0) target = $region25
    $region24: #{beta_vae_forward.1} parent=1 // pred_region
      _
    $region25: #{beta_vae_forward.1} parent=1 // pred_fallthru
      _
    // Predicated region
    $region26: #{beta_vae_forward.1} parent=1 // pred_check
      _
    $region27: #{beta_vae_forward.1} parent=1 // pred_check_branch
      %59 = sbr.rel (0) target = $region29
    $region28: #{beta_vae_forward.1} parent=1 // pred_region
      %s61 = ssub.s32 4096, 4096
      %62 = vsyncadd [#allocation6], %s61
      %s63 = sshll.u32 [#allocation7], 4
      %s64 = int_to_ptr.vmem [resolvable:$true] %s63
      %69 = dma.hbm_to_vmem [thread:$0]  %s6, 4096, %s64, [#allocation6], 256, 256, 16
    $region29: #{beta_vae_forward.1} parent=1 // pred_fallthru
      _
    // Predicated region
    $region30: #{beta_vae_forward.1} parent=1 // pred_check
      _
    $region31: #{beta_vae_forward.1} parent=1 // pred_check_branch
      %71 = sbr.rel (0) target = $region33
    $region32: #{beta_vae_forward.1} parent=1 // pred_region
      _
    $region33: #{beta_vae_forward.1} parent=1 // pred_fallthru
      _
    // Predicated region
    $region34: #{beta_vae_forward.1} parent=1 // pred_check
      _
    $region35: #{beta_vae_forward.1} parent=1 // pred_check_branch
      %73 = sbr.rel (0) target = $region37
    $region36: #{beta_vae_forward.1} parent=1 // pred_region
      %s75 = ssub.s32 2048, 2048
      %76 = vsyncadd [#allocation9], %s75
      %s77 = sshll.u32 [#allocation8], 4
      %s78 = int_to_ptr.vmem [resolvable:$true] %s77
      %83 = dma.hbm_to_vmem [thread:$0]  %s8, 2048, %s78, [#allocation9], 128, 128, 8
    $region37: #{beta_vae_forward.1} parent=1 // pred_fallthru
      _
    // Predicated region
    $region38: #{beta_vae_forward.1} parent=1 // pred_check
      _
    $region39: #{beta_vae_forward.1} parent=1 // pred_check_branch
      %85 = sbr.rel (0) target = $region41
    $region40: #{beta_vae_forward.1} parent=1 // pred_region
      _
    $region41: #{beta_vae_forward.1} parent=1 // pred_fallthru
      _
    // Predicated region
    $region42: #{beta_vae_forward.1} parent=1 // pred_check
      _
    $region43: #{beta_vae_forward.1} parent=1 // pred_check_branch
      %87 = sbr.rel (0) target = $region45
    $region44: #{beta_vae_forward.1} parent=1 // pred_region
      %s89 = ssub.s32 2048, 2048
      %90 = vsyncadd [#allocation9], %s89
      %s91 = sshll.u32 [#allocation10], 4
      %s92 = int_to_ptr.vmem [resolvable:$true] %s91
      %97 = dma.hbm_to_vmem [thread:$0]  %s10, 2048, %s92, [#allocation9], 128, 128, 8
    $region45: #{beta_vae_forward.1} parent=1 // pred_fallthru
      _
    // Predicated region
    $region46: #{beta_vae_forward.1} parent=1 // pred_check
      _
    $region47: #{beta_vae_forward.1} parent=1 // pred_check_branch
      %99 = sbr.rel (0) target = $region49
    $region48: #{beta_vae_forward.1} parent=1 // pred_region
      _
    $region49: #{beta_vae_forward.1} parent=1 // pred_fallthru
      _
    // Predicated region
    $region50: #{beta_vae_forward.1} parent=1 // pred_check
      _
    $region51: #{beta_vae_forward.1} parent=1 // pred_check_branch
      %101 = sbr.rel (0) target = $region53
    $region52: #{beta_vae_forward.1} parent=1 // pred_region
      %s103 = ssub.s32 2048, 2048
      %104 = vsyncadd [#allocation12], %s103
      %s105 = sshll.u32 [#allocation11], 4
      %s106 = int_to_ptr.vmem [resolvable:$true] %s105
      %111 = dma.hbm_to_vmem [thread:$0]  %s12, 2048, %s106, [#allocation12], 128, 128, 8
    $region53: #{beta_vae_forward.1} parent=1 // pred_fallthru
      _
    // Predicated region
    $region54: #{beta_vae_forward.1} parent=1 // pred_check
      _
    $region55: #{beta_vae_forward.1} parent=1 // pred_check_branch
      %113 = sbr.rel (0) target = $region57
    $region56: #{beta_vae_forward.1} parent=1 // pred_region
      _
    $region57: #{beta_vae_forward.1} parent=1 // pred_fallthru
      _
    // Predicated region
    $region58: #{beta_vae_forward.1} parent=1 // pred_check
      _
    $region59: #{beta_vae_forward.1} parent=1 // pred_check_branch
      %115 = sbr.rel (0) target = $region61
    $region60: #{beta_vae_forward.1} parent=1 // pred_region
      %116 = dma.done [#allocation3], 2048
    $region61: #{beta_vae_forward.1} parent=1 // pred_fallthru
      _
    // Predicated region
    $region62: #{beta_vae_forward.1} parent=1 // pred_check
      _
    $region63: #{beta_vae_forward.1} parent=1 // pred_check_branch
      %118 = sbr.rel (0) target = $region65
    $region64: #{beta_vae_forward.1} parent=1 // pred_region
      %119 = dma.done [#allocation6], 2048
    $region65: #{beta_vae_forward.1} parent=1 // pred_fallthru
      _
    // Predicated region
    $region66: #{beta_vae_forward.1} parent=1 // pred_check
      _
    $region67: #{beta_vae_forward.1} parent=1 // pred_check_branch
      %121 = sbr.rel (0) target = $region69
    $region68: #{beta_vae_forward.1} parent=1 // pred_region
      %122 = dma.done [#allocation6], 4096
    $region69: #{beta_vae_forward.1} parent=1 // pred_fallthru
      _
    // Predicated region
    $region70: #{beta_vae_forward.1} parent=1 // pred_check
      _
    $region71: #{beta_vae_forward.1} parent=1 // pred_check_branch
      %124 = sbr.rel (0) target = $region73
    $region72: #{beta_vae_forward.1} parent=1 // pred_region
      %125 = dma.done [#allocation9], 2048
    $region73: #{beta_vae_forward.1} parent=1 // pred_fallthru
      _
    // Predicated region
    $region74: #{beta_vae_forward.1} parent=1 // pred_check
      _
    $region75: #{beta_vae_forward.1} parent=1 // pred_check_branch
      %127 = sbr.rel (0) target = $region77
    $region76: #{beta_vae_forward.1} parent=1 // pred_region
      %128 = dma.done [#allocation9], 2048
    $region77: #{beta_vae_forward.1} parent=1 // pred_fallthru
      _
    // Predicated region
    $region78: #{beta_vae_forward.1} parent=1 // pred_check
      _
    $region79: #{beta_vae_forward.1} parent=1 // pred_check_branch
      %130 = sbr.rel (0) target = $region81
    $region80: #{beta_vae_forward.1} parent=1 // pred_region
      %131 = dma.done [#allocation12], 2048
    $region81: #{beta_vae_forward.1} parent=1 // pred_fallthru
      _
    %v132 = vld [vmem:[%s0] sm:$0xff]
    %v133 = vld [vmem:[%s3] sm:$0x1]
    %v134 = vld [vmem:[#allocation2] sm:$0xff]
    %v135 = vld [vmem:[#allocation2 + $0x8] sm:$0xff]
    %v136 = vld [vmem:[#allocation2 + $0x10] sm:$0xff]
    %v137 = vld [vmem:[#allocation2 + $0x18] sm:$0xff]
    %v138 = vld [vmem:[#allocation2 + $0x20] sm:$0xff]
    %v139 = vld [vmem:[#allocation2 + $0x28] sm:$0xff]
    %v140 = vld [vmem:[#allocation2 + $0x30] sm:$0xff]
    %v141 = vld [vmem:[#allocation2 + $0x38] sm:$0xff]
    %v142 = vld [vmem:[#allocation2 + $0x40] sm:$0xff]
    %v143 = vld [vmem:[#allocation2 + $0x48] sm:$0xff]
    %v144 = vld [vmem:[#allocation2 + $0x50] sm:$0xff]
    %v145 = vld [vmem:[#allocation2 + $0x58] sm:$0xff]
    %v146 = vld [vmem:[#allocation2 + $0x60] sm:$0xff]
    %v147 = vld [vmem:[#allocation2 + $0x68] sm:$0xff]
    %v148 = vld [vmem:[#allocation2 + $0x70] sm:$0xff]
    %v149 = vld [vmem:[#allocation2 + $0x78] sm:$0xff]
    %150 = vmatprep.subr.mxu0 0.0
    %151 = vmatpush1.msra.mxu0 %v134
    %152 = vmatprep.subr.mxu0 0.0
    %153 = vmatpush1.msra.mxu0 %v135
    %154 = vmatprep.subr.mxu0 0.0
    %155 = vmatpush1.msra.mxu0 %v136
    %156 = vmatprep.subr.mxu0 0.0
    %157 = vmatpush1.msra.mxu0 %v137
    %158 = vmatprep.subr.mxu0 0.0
    %159 = vmatpush1.msra.mxu0 %v138
    %160 = vmatprep.subr.mxu0 0.0
    %161 = vmatpush1.msra.mxu0 %v139
    %162 = vmatprep.subr.mxu0 0.0
    %163 = vmatpush1.msra.mxu0 %v140
    %164 = vmatprep.subr.mxu0 0.0
    %165 = vmatpush1.msra.mxu0 %v141
    %166 = vmatprep.subr.mxu0 0.0
    %167 = vmatpush1.msra.mxu0 %v142
    %168 = vmatprep.subr.mxu0 0.0
    %169 = vmatpush1.msra.mxu0 %v143
    %170 = vmatprep.subr.mxu0 0.0
    %171 = vmatpush1.msra.mxu0 %v144
    %172 = vmatprep.subr.mxu0 0.0
    %173 = vmatpush1.msra.mxu0 %v145
    %174 = vmatprep.subr.mxu0 0.0
    %175 = vmatpush1.msra.mxu0 %v146
    %176 = vmatprep.subr.mxu0 0.0
    %177 = vmatpush1.msra.mxu0 %v147
    %178 = vmatprep.subr.mxu0 0.0
    %179 = vmatpush1.msra.mxu0 %v148
    %180 = vmatprep.subr.mxu0 0.0
    %181 = vmatpush1.msra.mxu0 %v149
    %182 = vmatprep.subr.mxu0 0.0
    %183 = vmatpush1.msra.mxu0 0.0
    %184 = vmatprep.subr.mxu0 0.0
    %185 = vmatpush1.msra.mxu0 0.0
    %186 = vmatprep.subr.mxu0 0.0
    %187 = vmatpush1.msra.mxu0 0.0
    %188 = vmatprep.subr.mxu0 0.0
    %189 = vmatpush1.msra.mxu0 0.0
    %190 = vmatprep.subr.mxu0 0.0
    %191 = vmatpush1.msra.mxu0 0.0
    %192 = vmatprep.subr.mxu0 0.0
    %193 = vmatpush1.msra.mxu0 0.0
    %194 = vmatprep.subr.mxu0 0.0
    %195 = vmatpush1.msra.mxu0 0.0
    %196 = vmatprep.subr.mxu0 0.0
    %197 = vmatpush1.msra.mxu0 0.0
    %198 = vmatprep.subr.mxu0 0.0
    %199 = vmatpush1.msra.mxu0 0.0
    %200 = vmatprep.subr.mxu0 0.0
    %201 = vmatpush1.msra.mxu0 0.0
    %202 = vmatprep.subr.mxu0 0.0
    %203 = vmatpush1.msra.mxu0 0.0
    %204 = vmatprep.subr.mxu0 0.0
    %205 = vmatpush1.msra.mxu0 0.0
    %206 = vmatprep.subr.mxu0 0.0
    %207 = vmatpush1.msra.mxu0 0.0
    %208 = vmatprep.subr.mxu0 0.0
    %209 = vmatpush1.msra.mxu0 0.0
    %210 = vmatprep.subr.mxu0 0.0
    %211 = vmatpush1.msra.mxu0 0.0
    %212 = vmatprep.subr.mxu0 0.0
    %213 = vmatpush1.msra.mxu0 0.0
    %214 = vmatprep.mubr.f32.mxu0 0.0
    %215 = vmatmul.mubr.f32.gmra.mrb[0].mxu0 %v132
    %v216 = vpop.f32.mrb[0].mxu0
    %v217 = vadd.f32 0.0, %v216
    %v218 = vpop.f32.mrb[0].mxu0
    %219 = vdwg.mxu0
    %v221 = vlaneseq
    %v222 = vshrl.u32 %v221, 7
    %v223 = vsub.s32 0, %v222
    %v224 = vrot.slane %v133, %v223
    %v226 = vadd.f32 %v224, %v217
    %v227 = vmax.f32 %v226, 0.0
    %v228 = vld [vmem:[%s5] sm:$0x1]
    %v229 = vld [vmem:[#allocation5] sm:$0xff]
    %v230 = vld [vmem:[#allocation5 + $0x8] sm:$0xff]
    %v231 = vld [vmem:[#allocation5 + $0x10] sm:$0xff]
    %v232 = vld [vmem:[#allocation5 + $0x18] sm:$0xff]
    %v233 = vld [vmem:[#allocation5 + $0x20] sm:$0xff]
    %v234 = vld [vmem:[#allocation5 + $0x28] sm:$0xff]
    %v235 = vld [vmem:[#allocation5 + $0x30] sm:$0xff]
    %v236 = vld [vmem:[#allocation5 + $0x38] sm:$0xff]
    %v237 = vld [vmem:[#allocation5 + $0x40] sm:$0xff]
    %v238 = vld [vmem:[#allocation5 + $0x48] sm:$0xff]
    %v239 = vld [vmem:[#allocation5 + $0x50] sm:$0xff]
    %v240 = vld [vmem:[#allocation5 + $0x58] sm:$0xff]
    %v241 = vld [vmem:[#allocation5 + $0x60] sm:$0xff]
    %v242 = vld [vmem:[#allocation5 + $0x68] sm:$0xff]
    %v243 = vld [vmem:[#allocation5 + $0x70] sm:$0xff]
    %v244 = vld [vmem:[#allocation5 + $0x78] sm:$0xff]
    %245 = vmatprep.subr.mxu0 0.0
    %246 = vmatpush1.msra.mxu0 %v229
    %247 = vmatprep.subr.mxu0 0.0
    %248 = vmatpush1.msra.mxu0 %v230
    %249 = vmatprep.subr.mxu0 0.0
    %250 = vmatpush1.msra.mxu0 %v231
    %251 = vmatprep.subr.mxu0 0.0
    %252 = vmatpush1.msra.mxu0 %v232
    %253 = vmatprep.subr.mxu0 0.0
    %254 = vmatpush1.msra.mxu0 %v233
    %255 = vmatprep.subr.mxu0 0.0
    %256 = vmatpush1.msra.mxu0 %v234
    %257 = vmatprep.subr.mxu0 0.0
    %258 = vmatpush1.msra.mxu0 %v235
    %259 = vmatprep.subr.mxu0 0.0
    %260 = vmatpush1.msra.mxu0 %v236
    %261 = vmatprep.subr.mxu0 0.0
    %262 = vmatpush1.msra.mxu0 %v237
    %263 = vmatprep.subr.mxu0 0.0
    %264 = vmatpush1.msra.mxu0 %v238
    %265 = vmatprep.subr.mxu0 0.0
    %266 = vmatpush1.msra.mxu0 %v239
    %267 = vmatprep.subr.mxu0 0.0
    %268 = vmatpush1.msra.mxu0 %v240
    %269 = vmatprep.subr.mxu0 0.0
    %270 = vmatpush1.msra.mxu0 %v241
    %271 = vmatprep.subr.mxu0 0.0
    %272 = vmatpush1.msra.mxu0 %v242
    %273 = vmatprep.subr.mxu0 0.0
    %274 = vmatpush1.msra.mxu0 %v243
    %275 = vmatprep.subr.mxu0 0.0
    %276 = vmatpush1.msra.mxu0 %v244
    %277 = vmatprep.subr.mxu0 0.0
    %278 = vmatpush1.msra.mxu0 0.0
    %279 = vmatprep.subr.mxu0 0.0
    %280 = vmatpush1.msra.mxu0 0.0
    %281 = vmatprep.subr.mxu0 0.0
    %282 = vmatpush1.msra.mxu0 0.0
    %283 = vmatprep.subr.mxu0 0.0
    %284 = vmatpush1.msra.mxu0 0.0
    %285 = vmatprep.subr.mxu0 0.0
    %286 = vmatpush1.msra.mxu0 0.0
    %287 = vmatprep.subr.mxu0 0.0
    %288 = vmatpush1.msra.mxu0 0.0
    %289 = vmatprep.subr.mxu0 0.0
    %290 = vmatpush1.msra.mxu0 0.0
    %291 = vmatprep.subr.mxu0 0.0
    %292 = vmatpush1.msra.mxu0 0.0
    %293 = vmatprep.subr.mxu0 0.0
    %294 = vmatpush1.msra.mxu0 0.0
    %295 = vmatprep.subr.mxu0 0.0
    %296 = vmatpush1.msra.mxu0 0.0
    %297 = vmatprep.subr.mxu0 0.0
    %298 = vmatpush1.msra.mxu0 0.0
    %299 = vmatprep.subr.mxu0 0.0
    %300 = vmatpush1.msra.mxu0 0.0
    %301 = vmatprep.subr.mxu0 0.0
    %302 = vmatpush1.msra.mxu0 0.0
    %303 = vmatprep.subr.mxu0 0.0
    %304 = vmatpush1.msra.mxu0 0.0
    %305 = vmatprep.subr.mxu0 0.0
    %306 = vmatpush1.msra.mxu0 0.0
    %307 = vmatprep.subr.mxu0 0.0
    %308 = vmatpush1.msra.mxu0 0.0
    %309 = vmatprep.mubr.f32.mxu0 0.0
    %310 = vmatmul.mubr.f32.gmra.mrb[0].mxu0 %v227
    %v311 = vpop.f32.mrb[0].mxu0
    %v312 = vadd.f32 0.0, %v311
    %v313 = vpop.f32.mrb[0].mxu0
    %314 = vdwg.mxu0
    %v316 = vlaneseq
    %v317 = vshrl.u32 %v316, 7
    %v318 = vsub.s32 0, %v317
    %v319 = vrot.slane %v228, %v318
    %v321 = vadd.f32 %v319, %v312
    %v322 = vmax.f32 %v321, 0.0
    %v323 = vld [vmem:[%s7] sm:$0x3]
    %v324 = vld [vmem:[#allocation7] sm:$0xff]
    %v325 = vld [vmem:[#allocation7 + $0x8] sm:$0xff]
    %v326 = vld [vmem:[#allocation7 + $0x10] sm:$0xff]
    %v327 = vld [vmem:[#allocation7 + $0x18] sm:$0xff]
    %v328 = vld [vmem:[#allocation7 + $0x20] sm:$0xff]
    %v329 = vld [vmem:[#allocation7 + $0x28] sm:$0xff]
    %v330 = vld [vmem:[#allocation7 + $0x30] sm:$0xff]
    %v331 = vld [vmem:[#allocation7 + $0x38] sm:$0xff]
    %v332 = vld [vmem:[#allocation7 + $0x40] sm:$0xff]
    %v333 = vld [vmem:[#allocation7 + $0x48] sm:$0xff]
    %v334 = vld [vmem:[#allocation7 + $0x50] sm:$0xff]
    %v335 = vld [vmem:[#allocation7 + $0x58] sm:$0xff]
    %v336 = vld [vmem:[#allocation7 + $0x60] sm:$0xff]
    %v337 = vld [vmem:[#allocation7 + $0x68] sm:$0xff]
    %v338 = vld [vmem:[#allocation7 + $0x70] sm:$0xff]
    %v339 = vld [vmem:[#allocation7 + $0x78] sm:$0xff]
    %v340 = vld [vmem:[#allocation7 + $0x80] sm:$0xff]
    %v341 = vld [vmem:[#allocation7 + $0x88] sm:$0xff]
    %v342 = vld [vmem:[#allocation7 + $0x90] sm:$0xff]
    %v343 = vld [vmem:[#allocation7 + $0x98] sm:$0xff]
    %v344 = vld [vmem:[#allocation7 + $0xa0] sm:$0xff]
    %v345 = vld [vmem:[#allocation7 + $0xa8] sm:$0xff]
    %v346 = vld [vmem:[#allocation7 + $0xb0] sm:$0xff]
    %v347 = vld [vmem:[#allocation7 + $0xb8] sm:$0xff]
    %v348 = vld [vmem:[#allocation7 + $0xc0] sm:$0xff]
    %v349 = vld [vmem:[#allocation7 + $0xc8] sm:$0xff]
    %v350 = vld [vmem:[#allocation7 + $0xd0] sm:$0xff]
    %v351 = vld [vmem:[#allocation7 + $0xd8] sm:$0xff]
    %v352 = vld [vmem:[#allocation7 + $0xe0] sm:$0xff]
    %v353 = vld [vmem:[#allocation7 + $0xe8] sm:$0xff]
    %v354 = vld [vmem:[#allocation7 + $0xf0] sm:$0xff]
    %v355 = vld [vmem:[#allocation7 + $0xf8] sm:$0xff]
    %356 = vmatprep.subr.mxu0 %v325
    %357 = vmatpush1.msra.mxu0 %v324
    %358 = vmatprep.subr.mxu0 %v327
    %359 = vmatpush1.msra.mxu0 %v326
    %360 = vmatprep.subr.mxu0 %v329
    %361 = vmatpush1.msra.mxu0 %v328
    %362 = vmatprep.subr.mxu0 %v331
    %363 = vmatpush1.msra.mxu0 %v330
    %364 = vmatprep.subr.mxu0 %v333
    %365 = vmatpush1.msra.mxu0 %v332
    %366 = vmatprep.subr.mxu0 %v335
    %367 = vmatpush1.msra.mxu0 %v334
    %368 = vmatprep.subr.mxu0 %v337
    %369 = vmatpush1.msra.mxu0 %v336
    %370 = vmatprep.subr.mxu0 %v339
    %371 = vmatpush1.msra.mxu0 %v338
    %372 = vmatprep.subr.mxu0 %v341
    %373 = vmatpush1.msra.mxu0 %v340
    %374 = vmatprep.subr.mxu0 %v343
    %375 = vmatpush1.msra.mxu0 %v342
    %376 = vmatprep.subr.mxu0 %v345
    %377 = vmatpush1.msra.mxu0 %v344
    %378 = vmatprep.subr.mxu0 %v347
    %379 = vmatpush1.msra.mxu0 %v346
    %380 = vmatprep.subr.mxu0 %v349
    %381 = vmatpush1.msra.mxu0 %v348
    %382 = vmatprep.subr.mxu0 %v351
    %383 = vmatpush1.msra.mxu0 %v350
    %384 = vmatprep.subr.mxu0 %v353
    %385 = vmatpush1.msra.mxu0 %v352
    %386 = vmatprep.subr.mxu0 %v355
    %387 = vmatpush1.msra.mxu0 %v354
    %388 = vmatprep.subr.mxu0 0.0
    %389 = vmatpush1.msra.mxu0 0.0
    %390 = vmatprep.subr.mxu0 0.0
    %391 = vmatpush1.msra.mxu0 0.0
    %392 = vmatprep.subr.mxu0 0.0
    %393 = vmatpush1.msra.mxu0 0.0
    %394 = vmatprep.subr.mxu0 0.0
    %395 = vmatpush1.msra.mxu0 0.0
    %396 = vmatprep.subr.mxu0 0.0
    %397 = vmatpush1.msra.mxu0 0.0
    %398 = vmatprep.subr.mxu0 0.0
    %399 = vmatpush1.msra.mxu0 0.0
    %400 = vmatprep.subr.mxu0 0.0
    %401 = vmatpush1.msra.mxu0 0.0
    %402 = vmatprep.subr.mxu0 0.0
    %403 = vmatpush1.msra.mxu0 0.0
    %404 = vmatprep.subr.mxu0 0.0
    %405 = vmatpush1.msra.mxu0 0.0
    %406 = vmatprep.subr.mxu0 0.0
    %407 = vmatpush1.msra.mxu0 0.0
    %408 = vmatprep.subr.mxu0 0.0
    %409 = vmatpush1.msra.mxu0 0.0
    %410 = vmatprep.subr.mxu0 0.0
    %411 = vmatpush1.msra.mxu0 0.0
    %412 = vmatprep.subr.mxu0 0.0
    %413 = vmatpush1.msra.mxu0 0.0
    %414 = vmatprep.subr.mxu0 0.0
    %415 = vmatpush1.msra.mxu0 0.0
    %416 = vmatprep.subr.mxu0 0.0
    %417 = vmatpush1.msra.mxu0 0.0
    %418 = vmatprep.subr.mxu0 0.0
    %419 = vmatpush1.msra.mxu0 0.0
    %420 = vmatprep.mubr.f32.mxu0 0.0
    %421 = vmatmul.mubr.f32.gmra.mrb[0].mxu0 %v322
    %v422 = vpop.f32.mrb[0].mxu0
    %v423 = vadd.f32 0.0, %v422
    %v424 = vpop.f32.mrb[0].mxu0
    %v425 = vadd.f32 0.0, %v424
    %426 = vdwg.mxu0
    %v428 = vlaneseq
    %v429 = vshrl.u32 %v428, 7
    %v430 = vsub.s32 0, %v429
    %v431 = vrot.slane %v323, %v430
    %v432 = vlaneseq
    %v433 = vshrl.u32 %v432, 7
    %v434 = vsub.s32 1, %v433
    %v435 = vrot.slane %v323, %v434
    %v438 = vadd.f32 %v431, %v423
    %v439 = vadd.f32 %v435, %v425
    %v440 = vld [vmem:[%s1] sm:$0xff]
    %v441 = vmul.f32 %v439, 0.5
    %v442 = vmul.f32 %v441, 1.442695
    %v443 = vpow.pop %v442
    %v444 = vmul.f32 %v440, %v443
    %v445 = vadd.f32 %v438, %v444
    %v446 = vld [vmem:[%s9] sm:$0x1]
    %v447 = vld [vmem:[#allocation8] sm:$0xff]
    %v448 = vld [vmem:[#allocation8 + $0x8] sm:$0xff]
    %v449 = vld [vmem:[#allocation8 + $0x10] sm:$0xff]
    %v450 = vld [vmem:[#allocation8 + $0x18] sm:$0xff]
    %v451 = vld [vmem:[#allocation8 + $0x20] sm:$0xff]
    %v452 = vld [vmem:[#allocation8 + $0x28] sm:$0xff]
    %v453 = vld [vmem:[#allocation8 + $0x30] sm:$0xff]
    %v454 = vld [vmem:[#allocation8 + $0x38] sm:$0xff]
    %v455 = vld [vmem:[#allocation8 + $0x40] sm:$0xff]
    %v456 = vld [vmem:[#allocation8 + $0x48] sm:$0xff]
    %v457 = vld [vmem:[#allocation8 + $0x50] sm:$0xff]
    %v458 = vld [vmem:[#allocation8 + $0x58] sm:$0xff]
    %v459 = vld [vmem:[#allocation8 + $0x60] sm:$0xff]
    %v460 = vld [vmem:[#allocation8 + $0x68] sm:$0xff]
    %v461 = vld [vmem:[#allocation8 + $0x70] sm:$0xff]
    %v462 = vld [vmem:[#allocation8 + $0x78] sm:$0xff]
    %463 = vmatprep.subr.mxu0 0.0
    %464 = vmatpush1.msra.mxu0 %v447
    %465 = vmatprep.subr.mxu0 0.0
    %466 = vmatpush1.msra.mxu0 %v448
    %467 = vmatprep.subr.mxu0 0.0
    %468 = vmatpush1.msra.mxu0 %v449
    %469 = vmatprep.subr.mxu0 0.0
    %470 = vmatpush1.msra.mxu0 %v450
    %471 = vmatprep.subr.mxu0 0.0
    %472 = vmatpush1.msra.mxu0 %v451
    %473 = vmatprep.subr.mxu0 0.0
    %474 = vmatpush1.msra.mxu0 %v452
    %475 = vmatprep.subr.mxu0 0.0
    %476 = vmatpush1.msra.mxu0 %v453
    %477 = vmatprep.subr.mxu0 0.0
    %478 = vmatpush1.msra.mxu0 %v454
    %479 = vmatprep.subr.mxu0 0.0
    %480 = vmatpush1.msra.mxu0 %v455
    %481 = vmatprep.subr.mxu0 0.0
    %482 = vmatpush1.msra.mxu0 %v456
    %483 = vmatprep.subr.mxu0 0.0
    %484 = vmatpush1.msra.mxu0 %v457
    %485 = vmatprep.subr.mxu0 0.0
    %486 = vmatpush1.msra.mxu0 %v458
    %487 = vmatprep.subr.mxu0 0.0
    %488 = vmatpush1.msra.mxu0 %v459
    %489 = vmatprep.subr.mxu0 0.0
    %490 = vmatpush1.msra.mxu0 %v460
    %491 = vmatprep.subr.mxu0 0.0
    %492 = vmatpush1.msra.mxu0 %v461
    %493 = vmatprep.subr.mxu0 0.0
    %494 = vmatpush1.msra.mxu0 %v462
    %495 = vmatprep.subr.mxu0 0.0
    %496 = vmatpush1.msra.mxu0 0.0
    %497 = vmatprep.subr.mxu0 0.0
    %498 = vmatpush1.msra.mxu0 0.0
    %499 = vmatprep.subr.mxu0 0.0
    %500 = vmatpush1.msra.mxu0 0.0
    %501 = vmatprep.subr.mxu0 0.0
    %502 = vmatpush1.msra.mxu0 0.0
    %503 = vmatprep.subr.mxu0 0.0
    %504 = vmatpush1.msra.mxu0 0.0
    %505 = vmatprep.subr.mxu0 0.0
    %506 = vmatpush1.msra.mxu0 0.0
    %507 = vmatprep.subr.mxu0 0.0
    %508 = vmatpush1.msra.mxu0 0.0
    %509 = vmatprep.subr.mxu0 0.0
    %510 = vmatpush1.msra.mxu0 0.0
    %511 = vmatprep.subr.mxu0 0.0
    %512 = vmatpush1.msra.mxu0 0.0
    %513 = vmatprep.subr.mxu0 0.0
    %514 = vmatpush1.msra.mxu0 0.0
    %515 = vmatprep.subr.mxu0 0.0
    %516 = vmatpush1.msra.mxu0 0.0
    %517 = vmatprep.subr.mxu0 0.0
    %518 = vmatpush1.msra.mxu0 0.0
    %519 = vmatprep.subr.mxu0 0.0
    %520 = vmatpush1.msra.mxu0 0.0
    %521 = vmatprep.subr.mxu0 0.0
    %522 = vmatpush1.msra.mxu0 0.0
    %523 = vmatprep.subr.mxu0 0.0
    %524 = vmatpush1.msra.mxu0 0.0
    %525 = vmatprep.subr.mxu0 0.0
    %526 = vmatpush1.msra.mxu0 0.0
    %527 = vmatprep.mubr.f32.mxu0 0.0
    %528 = vmatmul.mubr.f32.gmra.mrb[0].mxu0 %v445
    %v529 = vpop.f32.mrb[0].mxu0
    %v530 = vadd.f32 0.0, %v529
    %v531 = vpop.f32.mrb[0].mxu0
    %532 = vdwg.mxu0
    %v534 = vlaneseq
    %v535 = vshrl.u32 %v534, 7
    %v536 = vsub.s32 0, %v535
    %v537 = vrot.slane %v446, %v536
    %v539 = vadd.f32 %v537, %v530
    %v540 = vmax.f32 %v539, 0.0
    %v541 = vld [vmem:[%s11] sm:$0x1]
    %v542 = vld [vmem:[#allocation10] sm:$0xff]
    %v543 = vld [vmem:[#allocation10 + $0x8] sm:$0xff]
    %v544 = vld [vmem:[#allocation10 + $0x10] sm:$0xff]
    %v545 = vld [vmem:[#allocation10 + $0x18] sm:$0xff]
    %v546 = vld [vmem:[#allocation10 + $0x20] sm:$0xff]
    %v547 = vld [vmem:[#allocation10 + $0x28] sm:$0xff]
    %v548 = vld [vmem:[#allocation10 + $0x30] sm:$0xff]
    %v549 = vld [vmem:[#allocation10 + $0x38] sm:$0xff]
    %v550 = vld [vmem:[#allocation10 + $0x40] sm:$0xff]
    %v551 = vld [vmem:[#allocation10 + $0x48] sm:$0xff]
    %v552 = vld [vmem:[#allocation10 + $0x50] sm:$0xff]
    %v553 = vld [vmem:[#allocation10 + $0x58] sm:$0xff]
    %v554 = vld [vmem:[#allocation10 + $0x60] sm:$0xff]
    %v555 = vld [vmem:[#allocation10 + $0x68] sm:$0xff]
    %v556 = vld [vmem:[#allocation10 + $0x70] sm:$0xff]
    %v557 = vld [vmem:[#allocation10 + $0x78] sm:$0xff]
    %558 = vmatprep.subr.mxu0 0.0
    %559 = vmatpush1.msra.mxu0 %v542
    %560 = vmatprep.subr.mxu0 0.0
    %561 = vmatpush1.msra.mxu0 %v543
    %562 = vmatprep.subr.mxu0 0.0
    %563 = vmatpush1.msra.mxu0 %v544
    %564 = vmatprep.subr.mxu0 0.0
    %565 = vmatpush1.msra.mxu0 %v545
    %566 = vmatprep.subr.mxu0 0.0
    %567 = vmatpush1.msra.mxu0 %v546
    %568 = vmatprep.subr.mxu0 0.0
    %569 = vmatpush1.msra.mxu0 %v547
    %570 = vmatprep.subr.mxu0 0.0
    %571 = vmatpush1.msra.mxu0 %v548
    %572 = vmatprep.subr.mxu0 0.0
    %573 = vmatpush1.msra.mxu0 %v549
    %574 = vmatprep.subr.mxu0 0.0
    %575 = vmatpush1.msra.mxu0 %v550
    %576 = vmatprep.subr.mxu0 0.0
    %577 = vmatpush1.msra.mxu0 %v551
    %578 = vmatprep.subr.mxu0 0.0
    %579 = vmatpush1.msra.mxu0 %v552
    %580 = vmatprep.subr.mxu0 0.0
    %581 = vmatpush1.msra.mxu0 %v553
    %582 = vmatprep.subr.mxu0 0.0
    %583 = vmatpush1.msra.mxu0 %v554
    %584 = vmatprep.subr.mxu0 0.0
    %585 = vmatpush1.msra.mxu0 %v555
    %586 = vmatprep.subr.mxu0 0.0
    %587 = vmatpush1.msra.mxu0 %v556
    %588 = vmatprep.subr.mxu0 0.0
    %589 = vmatpush1.msra.mxu0 %v557
    %590 = vmatprep.subr.mxu0 0.0
    %591 = vmatpush1.msra.mxu0 0.0
    %592 = vmatprep.subr.mxu0 0.0
    %593 = vmatpush1.msra.mxu0 0.0
    %594 = vmatprep.subr.mxu0 0.0
    %595 = vmatpush1.msra.mxu0 0.0
    %596 = vmatprep.subr.mxu0 0.0
    %597 = vmatpush1.msra.mxu0 0.0
    %598 = vmatprep.subr.mxu0 0.0
    %599 = vmatpush1.msra.mxu0 0.0
    %600 = vmatprep.subr.mxu0 0.0
    %601 = vmatpush1.msra.mxu0 0.0
    %602 = vmatprep.subr.mxu0 0.0
    %603 = vmatpush1.msra.mxu0 0.0
    %604 = vmatprep.subr.mxu0 0.0
    %605 = vmatpush1.msra.mxu0 0.0
    %606 = vmatprep.subr.mxu0 0.0
    %607 = vmatpush1.msra.mxu0 0.0
    %608 = vmatprep.subr.mxu0 0.0
    %609 = vmatpush1.msra.mxu0 0.0
    %610 = vmatprep.subr.mxu0 0.0
    %611 = vmatpush1.msra.mxu0 0.0
    %612 = vmatprep.subr.mxu0 0.0
    %613 = vmatpush1.msra.mxu0 0.0
    %614 = vmatprep.subr.mxu0 0.0
    %615 = vmatpush1.msra.mxu0 0.0
    %616 = vmatprep.subr.mxu0 0.0
    %617 = vmatpush1.msra.mxu0 0.0
    %618 = vmatprep.subr.mxu0 0.0
    %619 = vmatpush1.msra.mxu0 0.0
    %620 = vmatprep.subr.mxu0 0.0
    %621 = vmatpush1.msra.mxu0 0.0
    %622 = vmatprep.mubr.f32.mxu0 0.0
    %623 = vmatmul.mubr.f32.gmra.mrb[0].mxu0 %v540
    %v624 = vpop.f32.mrb[0].mxu0
    %v625 = vadd.f32 0.0, %v624
    %v626 = vpop.f32.mrb[0].mxu0
    %627 = vdwg.mxu0
    %v629 = vlaneseq
    %v630 = vshrl.u32 %v629, 7
    %v631 = vsub.s32 0, %v630
    %v632 = vrot.slane %v541, %v631
    %v634 = vadd.f32 %v632, %v625
    %v635 = vmax.f32 %v634, 0.0
    %v636 = vld [vmem:[%s13] sm:$0x1]
    %v637 = vld [vmem:[#allocation11] sm:$0xff]
    %v638 = vld [vmem:[#allocation11 + $0x8] sm:$0xff]
    %v639 = vld [vmem:[#allocation11 + $0x10] sm:$0xff]
    %v640 = vld [vmem:[#allocation11 + $0x18] sm:$0xff]
    %v641 = vld [vmem:[#allocation11 + $0x20] sm:$0xff]
    %v642 = vld [vmem:[#allocation11 + $0x28] sm:$0xff]
    %v643 = vld [vmem:[#allocation11 + $0x30] sm:$0xff]
    %v644 = vld [vmem:[#allocation11 + $0x38] sm:$0xff]
    %v645 = vld [vmem:[#allocation11 + $0x40] sm:$0xff]
    %v646 = vld [vmem:[#allocation11 + $0x48] sm:$0xff]
    %v647 = vld [vmem:[#allocation11 + $0x50] sm:$0xff]
    %v648 = vld [vmem:[#allocation11 + $0x58] sm:$0xff]
    %v649 = vld [vmem:[#allocation11 + $0x60] sm:$0xff]
    %v650 = vld [vmem:[#allocation11 + $0x68] sm:$0xff]
    %v651 = vld [vmem:[#allocation11 + $0x70] sm:$0xff]
    %v652 = vld [vmem:[#allocation11 + $0x78] sm:$0xff]
    %653 = vmatprep.subr.mxu0 0.0
    %654 = vmatpush1.msra.mxu0 %v637
    %655 = vmatprep.subr.mxu0 0.0
    %656 = vmatpush1.msra.mxu0 %v638
    %657 = vmatprep.subr.mxu0 0.0
    %658 = vmatpush1.msra.mxu0 %v639
    %659 = vmatprep.subr.mxu0 0.0
    %660 = vmatpush1.msra.mxu0 %v640
    %661 = vmatprep.subr.mxu0 0.0
    %662 = vmatpush1.msra.mxu0 %v641
    %663 = vmatprep.subr.mxu0 0.0
    %664 = vmatpush1.msra.mxu0 %v642
    %665 = vmatprep.subr.mxu0 0.0
    %666 = vmatpush1.msra.mxu0 %v643
    %667 = vmatprep.subr.mxu0 0.0
    %668 = vmatpush1.msra.mxu0 %v644
    %669 = vmatprep.subr.mxu0 0.0
    %670 = vmatpush1.msra.mxu0 %v645
    %671 = vmatprep.subr.mxu0 0.0
    %672 = vmatpush1.msra.mxu0 %v646
    %673 = vmatprep.subr.mxu0 0.0
    %674 = vmatpush1.msra.mxu0 %v647
    %675 = vmatprep.subr.mxu0 0.0
    %676 = vmatpush1.msra.mxu0 %v648
    %677 = vmatprep.subr.mxu0 0.0
    %678 = vmatpush1.msra.mxu0 %v649
    %679 = vmatprep.subr.mxu0 0.0
    %680 = vmatpush1.msra.mxu0 %v650
    %681 = vmatprep.subr.mxu0 0.0
    %682 = vmatpush1.msra.mxu0 %v651
    %683 = vmatprep.subr.mxu0 0.0
    %684 = vmatpush1.msra.mxu0 %v652
    %685 = vmatprep.subr.mxu0 0.0
    %686 = vmatpush1.msra.mxu0 0.0
    %687 = vmatprep.subr.mxu0 0.0
    %688 = vmatpush1.msra.mxu0 0.0
    %689 = vmatprep.subr.mxu0 0.0
    %690 = vmatpush1.msra.mxu0 0.0
    %691 = vmatprep.subr.mxu0 0.0
    %692 = vmatpush1.msra.mxu0 0.0
    %693 = vmatprep.subr.mxu0 0.0
    %694 = vmatpush1.msra.mxu0 0.0
    %695 = vmatprep.subr.mxu0 0.0
    %696 = vmatpush1.msra.mxu0 0.0
    %697 = vmatprep.subr.mxu0 0.0
    %698 = vmatpush1.msra.mxu0 0.0
    %699 = vmatprep.subr.mxu0 0.0
    %700 = vmatpush1.msra.mxu0 0.0
    %701 = vmatprep.subr.mxu0 0.0
    %702 = vmatpush1.msra.mxu0 0.0
    %703 = vmatprep.subr.mxu0 0.0
    %704 = vmatpush1.msra.mxu0 0.0
    %705 = vmatprep.subr.mxu0 0.0
    %706 = vmatpush1.msra.mxu0 0.0
    %707 = vmatprep.subr.mxu0 0.0
    %708 = vmatpush1.msra.mxu0 0.0
    %709 = vmatprep.subr.mxu0 0.0
    %710 = vmatpush1.msra.mxu0 0.0
    %711 = vmatprep.subr.mxu0 0.0
    %712 = vmatpush1.msra.mxu0 0.0
    %713 = vmatprep.subr.mxu0 0.0
    %714 = vmatpush1.msra.mxu0 0.0
    %715 = vmatprep.subr.mxu0 0.0
    %716 = vmatpush1.msra.mxu0 0.0
    %717 = vmatprep.mubr.f32.mxu0 0.0
    %718 = vmatmul.mubr.f32.gmra.mrb[0].mxu0 %v635
    %v719 = vpop.f32.mrb[0].mxu0
    %v720 = vadd.f32 0.0, %v719
    %v721 = vpop.f32.mrb[0].mxu0
    %722 = vdwg.mxu0
    %v724 = vlaneseq
    %v725 = vshrl.u32 %v724, 7
    %v726 = vsub.s32 0, %v725
    %v727 = vrot.slane %v636, %v726
    %v729 = vadd.f32 %v727, %v720
    %v730 = vxor.u32 %v729, 2147483648
    %v731 = vmul.f32 %v730, 1.442695
    %v732 = vpow.pop %v731
    %v733 = vadd.f32 %v732, 1.0
    %v734 = vrcp.pop %v733
    %v735 = vmul.f32 1.0, %v734
    %736 = vst [vmem:[#allocation13] sm:$0xff] %v735
    %737 = vst [vmem:[%s15] sm:$0xff] %v438
    %738 = vst [vmem:[%s15 + $0x8] sm:$0xff] %v439
    // Predicated region
    $region82: #{beta_vae_forward.1} parent=1 // pred_check
      _
    $region83: #{beta_vae_forward.1} parent=1 // pred_check_branch
      %740 = sbr.rel (0) target = $region85
    $region84: #{beta_vae_forward.1} parent=1 // pred_region
      %s742 = ssub.s32 128, 128
      %743 = vsyncadd [#allocation4], %s742
      %s745 = sshll.u32 [#allocation13], 4
      %s746 = int_to_ptr.vmem [resolvable:$true] %s745
      %748 = dma.vmem_to_hbm [thread:$0]  %s746, 128, %s14, [#allocation4]
    $region85: #{beta_vae_forward.1} parent=1 // pred_fallthru
      _
    // Predicated region
    $region86: #{beta_vae_forward.1} parent=1 // pred_check
      _
    $region87: #{beta_vae_forward.1} parent=1 // pred_check_branch
      %750 = sbr.rel (0) target = $region89
    $region88: #{beta_vae_forward.1} parent=1 // pred_region
      _
    $region89: #{beta_vae_forward.1} parent=1 // pred_fallthru
      _
    // Predicated region
    $region90: #{beta_vae_forward.1} parent=1 // pred_check
      _
    $region91: #{beta_vae_forward.1} parent=1 // pred_check_branch
      %752 = sbr.rel (0) target = $region93
    $region92: #{beta_vae_forward.1} parent=1 // pred_region
      %753 = dma.done [#allocation4], 128
    $region93: #{beta_vae_forward.1} parent=1 // pred_fallthru
      _
    // Predicated region
    $region94: #{beta_vae_forward.1} parent=1 // pred_check
      _
    $region95: #{beta_vae_forward.1} parent=1 // pred_check_branch
      %755 = sbr.rel (0) target = $region97
    $region96: #{beta_vae_forward.1} parent=1 // pred_region
      _
    $region97: #{beta_vae_forward.1} parent=1 // pred_fallthru
      _
    %756 = vsyncpa [#allocation3], 1
    %757 = vsyncpa [#allocation6], 1
    %758 = vsyncpa [#allocation9], 1
    %759 = vsyncpa [#allocation12], 1
    %760 = vsyncpa [#allocation4], 1

</llo_original>
